<compile_context>
chip_gen: v5e
topology: v5e:2x2
jax: 0.10.0
libtpu: 0.0.40
codegen_flags: <defaults>
</compile_context>

<pallas_src>
import functools

import jax
import jax.numpy as jnp
from jax.experimental import pallas as pl
from jax.experimental.pallas import tpu as pltpu


def _bilinear_matrix(in_size: int, out_size: int) -> jnp.ndarray:
    """Row-stochastic (out_size, in_size) matrix reproducing
    F.interpolate(mode='bilinear', align_corners=False) along one axis."""
    dst = jnp.arange(out_size, dtype=jnp.float32)
    src = (dst + 0.5) * (float(in_size) / float(out_size)) - 0.5
    src = jnp.clip(src, 0.0, float(in_size - 1))
    i0 = jnp.clip(jnp.floor(src).astype(jnp.int32), 0, in_size - 1)
    i1 = jnp.clip(i0 + 1, 0, in_size - 1)
    lam = src - i0.astype(jnp.float32)
    oh0 = jax.nn.one_hot(i0, in_size, dtype=jnp.float32)
    oh1 = jax.nn.one_hot(i1, in_size, dtype=jnp.float32)
    return (1.0 - lam)[:, None] * oh0 + lam[:, None] * oh1


def _to_image_kernel(x_ref, w_ref, b_ref, awt_ref, ah_ref, o_ref, *,
                     conv_first, C, O, H, W, Hout, Wout):
    """One batch item per grid step.

    x_ref  : (1, C, H, W)        f32 input feature map
    w_ref  : (C, O, 1, 1)        f32 1x1-conv weight (transposed for per-c FMA)
    b_ref  : (O, 1, 1)           f32 conv bias
    awt_ref: (W, Wout)           bf16 bilinear matrix along W (transposed)
    ah_ref : (Hout, H)           bf16 bilinear matrix along H
    o_ref  : (1, O, Hout, Wout)  f32 output
    """
    x3 = x_ref[0]                      # (C, H, W)  f32
    wt = w_ref[...]                    # (C, O, 1, 1) f32
    bb = b_ref[...]                    # (O, 1, 1) f32

    def conv1x1(feat):
        # Pointwise conv as C rank-1 VPU FMAs: keeps the MXU free for the
        # resize and avoids a heavily padded (O,C)-contraction matmul.
        # TODO(synk): for large C switch back to a single 2-D MXU matmul.
        out_sp = feat.shape[1:]
        acc = jnp.broadcast_to(bb, (O,) + out_sp)            # bias, f32
        for c in range(C):                                    # static unroll
            acc = acc + wt[c] * feat[c]                       # (O,1,1)*(A,B)
        return acc                                            # (O, A, B) f32

    def resize(feat, ch):
        # Separable bilinear upsample (align_corners=False):
        #   pass 1: contract W -> (ch*H, Wout)      single 2-D MXU matmul
        #   pass 2: contract H -> (ch, Hout, Wout)  channel-batched matmul
        # bf16 MXU operands, f32 accumulation.
        t = jnp.dot(feat.reshape(ch * H, W).astype(jnp.bfloat16),
                    awt_ref[...],
                    preferred_element_type=jnp.float32)       # (ch*H, Wout)
        t3 = t.reshape(ch, H, Wout).astype(jnp.bfloat16)      # (ch, H, Wout)
        ah_b = jnp.broadcast_to(ah_ref[...], (ch, Hout, H))   # bf16
        return jnp.einsum('cph,chq->cpq', ah_b, t3,
                          preferred_element_type=jnp.float32)  # (ch,Hout,Wout)

    if conv_first:     # O <= C: project to fewer channels first, then resize.
        y = resize(conv1x1(x3), O)
    else:              # C < O: resize the cheaper C channels, then project.
        y = conv1x1(resize(x3, C))

    o_ref[0] = y.astype(o_ref.dtype)


def to_image_bilinear(x, weight, bias, scale_factor):
    """x: (N, C, H, W) f32, weight: (O, C), bias: (O,) -> (N, O, H*s, W*s)."""
    N, C, H, W = x.shape
    O = weight.shape[0]
    Hout, Wout = int(H * scale_factor), int(W * scale_factor)

    # Tiny per-axis bilinear matrices; built from static shapes so they fold
    # into the compiled executable. bf16 for the MXU (exact for scale=2).
    ah = _bilinear_matrix(H, Hout).astype(jnp.bfloat16)        # (Hout, H)
    awt = _bilinear_matrix(W, Wout).T.astype(jnp.bfloat16)     # (W, Wout)

    wt = jnp.transpose(weight, (1, 0))[:, :, None, None].astype(jnp.float32)
    b3 = bias.reshape(O, 1, 1).astype(jnp.float32)

    conv_first = O <= C   # min(C, O) channels ride through the resize

    kernel = functools.partial(
        _to_image_kernel, conv_first=conv_first,
        C=C, O=O, H=H, W=W, Hout=Hout, Wout=Wout)

    out = pl.pallas_call(
        kernel,
        out_shape=jax.ShapeDtypeStruct((N, O, Hout, Wout), x.dtype),
        grid_spec=pltpu.PrefetchScalarGridSpec(
            num_scalar_prefetch=0,
            grid=(N,),
            in_specs=[
                pl.BlockSpec((1, C, H, W), lambda n: (n, 0, 0, 0)),
                # Grid-invariant operands below are a few KiB total here; at
                # larger sizes single-buffer them (pl.Buffered(1)) or stage
                # them once into VMEM scratch to avoid double-buffering.
                pl.BlockSpec((C, O, 1, 1), lambda n: (0, 0, 0, 0)),
                pl.BlockSpec((O, 1, 1), lambda n: (0, 0, 0)),
                pl.BlockSpec((W, Wout), lambda n: (0, 0)),
                pl.BlockSpec((Hout, H), lambda n: (0, 0)),
            ],
            out_specs=pl.BlockSpec((1, O, Hout, Wout),
                                   lambda n: (n, 0, 0, 0)),
        ),
        compiler_params=pltpu.CompilerParams(
            dimension_semantics=("parallel",)),   # batch across TCs (v7x)
    )(x, wt, b3, awt, ah)

    return out


def _reference(x, weight, bias, scale_factor):
    """Pure-JAX f32 reference: conv1x1 then separable bilinear resize."""
    N, C, H, W = x.shape
    Hout, Wout = int(H * scale_factor), int(W * scale_factor)
    Ah = _bilinear_matrix(H, Hout)
    Aw = _bilinear_matrix(W, Wout)
    hp = jax.lax.Precision.HIGHEST
    z = jnp.einsum('oc,nchw->nohw', weight, x, precision=hp) \
        + bias[None, :, None, None]
    return jnp.einsum('ph,qw,nohw->nopq', Ah, Aw, z, precision=hp)


if __name__ == "__main__":
    in_channels, out_channels, scale_factor = 4, 8, 2
    N, H, W = 2, 16, 16

    key = jax.random.PRNGKey(0)
    kx, kw, kb = jax.random.split(key, 3)
    x = jax.random.normal(kx, (N, in_channels, H, W), dtype=jnp.float32)
    # Deterministic synthetic init for the 1x1 conv (basic_module_init stand-in).
    weight = 0.02 * jax.random.normal(kw, (out_channels, in_channels),
                                      dtype=jnp.float32)
    bias = 0.01 * jax.random.normal(kb, (out_channels,), dtype=jnp.float32)

    fn = jax.jit(to_image_bilinear, static_argnames=("scale_factor",))
    out = jax.block_until_ready(fn(x, weight, bias, scale_factor=scale_factor))

    ref = _reference(x, weight, bias, scale_factor)
    assert out.shape == (N, out_channels, H * scale_factor, W * scale_factor)
    # Tolerance sized for bf16 MXU operands with f32 accumulation.
    assert jnp.allclose(out, ref, atol=3e-2, rtol=3e-2), "mismatch vs reference"

    print("KERNEL_OK")
</pallas_src>

<mosaic_0001>
module attributes {stable_mosaic.version = 11 : i64} {
  func.func @_to_image_kernel(%arg0: i32, %arg1: memref<1x4x16x16xf32, #tpu.memory_space<vmem>>, %arg2: memref<4x8x1x1xf32, #tpu.memory_space<vmem>>, %arg3: memref<8x1x1xf32, #tpu.memory_space<vmem>>, %arg4: memref<16x32xbf16, #tpu.memory_space<vmem>>, %arg5: memref<32x16xbf16, #tpu.memory_space<vmem>>, %arg6: memref<1x8x32x32xf32, #tpu.memory_space<vmem>>) attributes {dimension_semantics = [#tpu.dimension_semantics<parallel>], iteration_bounds = array<i64: 2>, scalar_prefetch = 0 : i64, scratch_operands = 0 : i64, tpu.core_type = #tpu.core_type<tc>, window_params = [{transform_indices = @transform_0, window_bounds = array<i64: 1, 4, 16, 16>}, {pipeline_mode = #tpu.pipeline_mode<synchronous>, transform_indices = @transform_1, window_bounds = array<i64: 4, 8, 1, 1>}, {pipeline_mode = #tpu.pipeline_mode<synchronous>, transform_indices = @transform_2, window_bounds = array<i64: 8, 1, 1>}, {pipeline_mode = #tpu.pipeline_mode<synchronous>, transform_indices = @transform_3, window_bounds = array<i64: 16, 32>}, {pipeline_mode = #tpu.pipeline_mode<synchronous>, transform_indices = @transform_4, window_bounds = array<i64: 32, 16>}, {transform_indices = @transform_5, window_bounds = array<i64: 1, 8, 32, 32>}]} {
    %c0 = arith.constant 0 : index
    %c0_0 = arith.constant 0 : index
    %c0_1 = arith.constant 0 : index
    %c0_2 = arith.constant 0 : index
    %0 = vector.load %arg1[%c0, %c0_0, %c0_1, %c0_2] : memref<1x4x16x16xf32, #tpu.memory_space<vmem>>, vector<1x4x16x16xf32>
    %1 = vector.shape_cast %0 : vector<1x4x16x16xf32> to vector<4x16x16xf32>
    %c0_3 = arith.constant 0 : index
    %c0_4 = arith.constant 0 : index
    %c0_5 = arith.constant 0 : index
    %c0_6 = arith.constant 0 : index
    %2 = vector.load %arg2[%c0_3, %c0_4, %c0_5, %c0_6] : memref<4x8x1x1xf32, #tpu.memory_space<vmem>>, vector<4x8x1x1xf32>
    %c0_7 = arith.constant 0 : index
    %c0_8 = arith.constant 0 : index
    %c0_9 = arith.constant 0 : index
    %3 = vector.load %arg3[%c0_7, %c0_8, %c0_9] : memref<8x1x1xf32, #tpu.memory_space<vmem>>, vector<8x1x1xf32>
    %4 = vector.shape_cast %1 : vector<4x16x16xf32> to vector<64x16xf32>
    %5 = arith.truncf %4 : vector<64x16xf32> to vector<64x16xbf16>
    %c0_10 = arith.constant 0 : index
    %c0_11 = arith.constant 0 : index
    %6 = vector.load %arg4[%c0_10, %c0_11] : memref<16x32xbf16, #tpu.memory_space<vmem>>, vector<16x32xbf16>
    %cst = arith.constant dense<0.000000e+00> : vector<64x32xf32>
    %7 = tpu.matmul %5, %6, %cst {dimension_numbers = #tpu.dot_dimension_numbers<[1], [0], [0], [1], [0, 0, 1, 1], [], []>} : vector<64x16xbf16>, vector<16x32xbf16>, vector<64x32xf32> -> vector<64x32xf32>
    %8 = vector.shape_cast %7 : vector<64x32xf32> to vector<4x16x32xf32>
    %9 = arith.truncf %8 : vector<4x16x32xf32> to vector<4x16x32xbf16>
    %c0_12 = arith.constant 0 : index
    %c0_13 = arith.constant 0 : index
    %10 = vector.load %arg5[%c0_12, %c0_13] : memref<32x16xbf16, #tpu.memory_space<vmem>>, vector<32x16xbf16>
    %11 = vector.shape_cast %10 : vector<32x16xbf16> to vector<1x32x16xbf16>
    %12 = vector.broadcast %11 : vector<1x32x16xbf16> to vector<4x32x16xbf16>
    "tpu.trace_start"() <{level = 10 : i32, message = "cph,chq->cpq"}> : () -> ()
    %cst_14 = arith.constant dense<0.000000e+00> : vector<4x32x32xf32>
    %13 = tpu.matmul %12, %9, %cst_14 {dimension_numbers = #tpu.dot_dimension_numbers<[2], [1], [1], [2], [0, 0, 0, 1, 1, 2], [0], [0]>} : vector<4x32x16xbf16>, vector<4x16x32xbf16>, vector<4x32x32xf32> -> vector<4x32x32xf32>
    "tpu.trace_stop"() : () -> ()
    %14 = vector.shape_cast %3 : vector<8x1x1xf32> to vector<8x1x1xf32>
    %15 = vector.broadcast %14 : vector<8x1x1xf32> to vector<8x32x32xf32>
    %16 = vector.extract_strided_slice %2 {offsets = [0, 0, 0, 0], sizes = [1, 8, 1, 1], strides = [1, 1, 1, 1]} : vector<4x8x1x1xf32> to vector<1x8x1x1xf32>
    %17 = vector.shape_cast %16 : vector<1x8x1x1xf32> to vector<8x1x1xf32>
    %18 = vector.extract_strided_slice %13 {offsets = [0, 0, 0], sizes = [1, 32, 32], strides = [1, 1, 1]} : vector<4x32x32xf32> to vector<1x32x32xf32>
    %19 = vector.shape_cast %18 : vector<1x32x32xf32> to vector<32x32xf32>
    %20 = vector.shape_cast %19 : vector<32x32xf32> to vector<1x32x32xf32>
    %21 = vector.broadcast %17 : vector<8x1x1xf32> to vector<8x32x32xf32>
    %22 = vector.broadcast %20 : vector<1x32x32xf32> to vector<8x32x32xf32>
    %23 = arith.mulf %21, %22 : vector<8x32x32xf32>
    %24 = arith.addf %15, %23 : vector<8x32x32xf32>
    %25 = vector.extract_strided_slice %2 {offsets = [1, 0, 0, 0], sizes = [1, 8, 1, 1], strides = [1, 1, 1, 1]} : vector<4x8x1x1xf32> to vector<1x8x1x1xf32>
    %26 = vector.shape_cast %25 : vector<1x8x1x1xf32> to vector<8x1x1xf32>
    %27 = vector.extract_strided_slice %13 {offsets = [1, 0, 0], sizes = [1, 32, 32], strides = [1, 1, 1]} : vector<4x32x32xf32> to vector<1x32x32xf32>
    %28 = vector.shape_cast %27 : vector<1x32x32xf32> to vector<32x32xf32>
    %29 = vector.shape_cast %28 : vector<32x32xf32> to vector<1x32x32xf32>
    %30 = vector.broadcast %26 : vector<8x1x1xf32> to vector<8x32x32xf32>
    %31 = vector.broadcast %29 : vector<1x32x32xf32> to vector<8x32x32xf32>
    %32 = arith.mulf %30, %31 : vector<8x32x32xf32>
    %33 = arith.addf %24, %32 : vector<8x32x32xf32>
    %34 = vector.extract_strided_slice %2 {offsets = [2, 0, 0, 0], sizes = [1, 8, 1, 1], strides = [1, 1, 1, 1]} : vector<4x8x1x1xf32> to vector<1x8x1x1xf32>
    %35 = vector.shape_cast %34 : vector<1x8x1x1xf32> to vector<8x1x1xf32>
    %36 = vector.extract_strided_slice %13 {offsets = [2, 0, 0], sizes = [1, 32, 32], strides = [1, 1, 1]} : vector<4x32x32xf32> to vector<1x32x32xf32>
    %37 = vector.shape_cast %36 : vector<1x32x32xf32> to vector<32x32xf32>
    %38 = vector.shape_cast %37 : vector<32x32xf32> to vector<1x32x32xf32>
    %39 = vector.broadcast %35 : vector<8x1x1xf32> to vector<8x32x32xf32>
    %40 = vector.broadcast %38 : vector<1x32x32xf32> to vector<8x32x32xf32>
    %41 = arith.mulf %39, %40 : vector<8x32x32xf32>
    %42 = arith.addf %33, %41 : vector<8x32x32xf32>
    %43 = vector.extract_strided_slice %2 {offsets = [3, 0, 0, 0], sizes = [1, 8, 1, 1], strides = [1, 1, 1, 1]} : vector<4x8x1x1xf32> to vector<1x8x1x1xf32>
    %44 = vector.shape_cast %43 : vector<1x8x1x1xf32> to vector<8x1x1xf32>
    %45 = vector.extract_strided_slice %13 {offsets = [3, 0, 0], sizes = [1, 32, 32], strides = [1, 1, 1]} : vector<4x32x32xf32> to vector<1x32x32xf32>
    %46 = vector.shape_cast %45 : vector<1x32x32xf32> to vector<32x32xf32>
    %47 = vector.shape_cast %46 : vector<32x32xf32> to vector<1x32x32xf32>
    %48 = vector.broadcast %44 : vector<8x1x1xf32> to vector<8x32x32xf32>
    %49 = vector.broadcast %47 : vector<1x32x32xf32> to vector<8x32x32xf32>
    %50 = arith.mulf %48, %49 : vector<8x32x32xf32>
    %51 = arith.addf %42, %50 : vector<8x32x32xf32>
    %c0_15 = arith.constant 0 : index
    %c0_16 = arith.constant 0 : index
    %c0_17 = arith.constant 0 : index
    %c0_18 = arith.constant 0 : index
    %52 = vector.load %arg6[%c0_15, %c0_16, %c0_17, %c0_18] : memref<1x8x32x32xf32, #tpu.memory_space<vmem>>, vector<1x8x32x32xf32>
    %53 = vector.shape_cast %52 : vector<1x8x32x32xf32> to vector<8x32x32xf32>
    %54 = vector.shape_cast %51 : vector<8x32x32xf32> to vector<1x8x32x32xf32>
    tpu.vector_store %arg6[%c0_15, %c0_16, %c0_17, %c0_18], %54 {strides = array<i32>} : memref<1x8x32x32xf32, #tpu.memory_space<vmem>>, vector<1x8x32x32xf32>,
    return
  }
  func.func @transform_0(%arg0: i32) -> (i32, i32, i32, i32) {
    %c0_i32 = arith.constant 0 : i32
    %c0_i32_0 = arith.constant 0 : i32
    %c0_i32_1 = arith.constant 0 : i32
    %c0_i32_2 = arith.constant 0 : i32
    return %arg0, %c0_i32, %c0_i32_0, %c0_i32_1 : i32, i32, i32, i32
  }
  func.func @transform_1(%arg0: i32) -> (i32, i32, i32, i32) {
    %c0_i32 = arith.constant 0 : i32
    %c0_i32_0 = arith.constant 0 : i32
    %c0_i32_1 = arith.constant 0 : i32
    %c0_i32_2 = arith.constant 0 : i32
    %c0_i32_3 = arith.constant 0 : i32
    return %c0_i32, %c0_i32_0, %c0_i32_1, %c0_i32_2 : i32, i32, i32, i32
  }
  func.func @transform_2(%arg0: i32) -> (i32, i32, i32) {
    %c0_i32 = arith.constant 0 : i32
    %c0_i32_0 = arith.constant 0 : i32
    %c0_i32_1 = arith.constant 0 : i32
    %c0_i32_2 = arith.constant 0 : i32
    return %c0_i32, %c0_i32_0, %c0_i32_1 : i32, i32, i32
  }
  func.func @transform_3(%arg0: i32) -> (i32, i32) {
    %c0_i32 = arith.constant 0 : i32
    %c0_i32_0 = arith.constant 0 : i32
    %c0_i32_1 = arith.constant 0 : i32
    return %c0_i32, %c0_i32_0 : i32, i32
  }
  func.func @transform_4(%arg0: i32) -> (i32, i32) {
    %c0_i32 = arith.constant 0 : i32
    %c0_i32_0 = arith.constant 0 : i32
    %c0_i32_1 = arith.constant 0 : i32
    return %c0_i32, %c0_i32_0 : i32, i32
  }
  func.func @transform_5(%arg0: i32) -> (i32, i32, i32, i32) {
    %c0_i32 = arith.constant 0 : i32
    %c0_i32_0 = arith.constant 0 : i32
    %c0_i32_1 = arith.constant 0 : i32
    %c0_i32_2 = arith.constant 0 : i32
    return %arg0, %c0_i32, %c0_i32_0, %c0_i32_1 : i32, i32, i32, i32
  }
}

</mosaic_0001>

<llo_original>
// kernel: to_image_bilinear.1
$region0: #{to_image_bilinear.1}
  #allocation0 [shape = 'u32[]', space=smem, size = 0x4, offset = 0x4, fixed_abs, tag = 'smem constant byte address 0x4 - core index']
  #allocation1 [shape = 'u32[72,128]{1,0:T(1,128)}', space=vmem, size = 0x9000, scoped, tag = 'internal scratch']
  %s0 = inlined_call_operand.hbm [shape: f32[2,4,16,16], index: 0, kind: input, shape index: {}]
  %s1 = inlined_call_operand.vmem [shape: f32[4,8,1,1], index: 1, kind: input, shape index: {}]
  %s2 = inlined_call_operand.vmem [shape: f32[8,1,1], index: 2, kind: input, shape index: {}]
  %s3 = inlined_call_operand.vmem [shape: bf16[16,32], index: 3, kind: input, shape index: {}]
  %s4 = inlined_call_operand.vmem [shape: bf16[32,16], index: 4, kind: input, shape index: {}]
  %s5 = inlined_call_operand.hbm [shape: f32[2,8,32,32], index: 5, kind: output, shape index: {}]
  %s6 = sld [smem:[#allocation0]]
  $region57: #{to_image_bilinear.1} parent=0
    _
  %s8 = ssub.s32 1, %s6
  %s9 = scalar_select 0, %s8, %s6
  $region1: #{to_image_bilinear.1} parent=0
    #allocation2 [shape = 'u8[65536]{0}', space=vmem, size = 0x10000, scoped, tag = 'input window, operand 0']
    #allocation3 [shape = 's32[2]{0}', space=sflag, size = 0x8, scoped, tag = 'scoped memory for to_image_bilinear.1']
    #allocation4 [shape = 's32[2]{0}', space=sflag, size = 0x8, scoped, tag = 'scoped memory for to_image_bilinear.1']
    #allocation5 [shape = 'u8[262144]{0}', space=vmem, size = 0x40000, scoped, tag = 'output window, operand 0']
    %10 = vsyncpa [#allocation3], 0
    %s11 = scalar_lea.sflag [#allocation3], 1
    %12 = vsyncpa %s11, 0
    %13 = vsyncpa [#allocation4], 0
    %s14 = scalar_lea.sflag [#allocation4], 1
    %15 = vsyncpa %s14, 0
    loop: start=0, step=1, limit=4
    $region2: #{to_image_bilinear.1} parent=1 // loop_pre_header
      _
    $region3: #{to_image_bilinear.1} parent=1 // loop_header
      %s17 = sphi 0, %s21
      %p18 = scmp.ge.s32.totalorder %s17, 4
      %s27 = sphi 0, %s29
      %s30 = sphi 0, %s27
      %s31 = sphi 0, %s30
      %s47 = sphi 0, %s31
      %s51 = sphi 0, %s51
      %s53 = sphi 0, %s51
      %s54 = sphi 0, %s53
      %s68 = sphi 0, %s54
      %s72 = sphi 0, %s72
      %s74 = sphi 0, %s72
      %s75 = sphi 0, %s74
      %s89 = sphi 0, %s75
      %s93 = sphi 0, %s93
      %s95 = sphi 0, %s93
      %s96 = sphi 0, %s95
      %s110 = sphi 0, %s96
      %s114 = sphi 0, %s114
      %s116 = sphi 0, %s114
      %s117 = sphi 0, %s116
      %s131 = sphi 0, %s117
      %s137 = sphi 0, %s139
      %s140 = sphi 0, %s137
      %s141 = sphi 0, %s140
      %s157 = sphi 0, %s141
    $region4: #{to_image_bilinear.1} parent=1 // loop_header_branch
      %20 = sbr.rel (%p18) target = $region8
    $region5: #{to_image_bilinear.1} parent=1 // loop_body
      %s22 = ssub.s32 %s17, 1
      %s23 = ssub.s32 %s17, 2
      %s24 = sadd.s32 %s17, 1
      %s25 = ssub.s32 %s17, %s24
      %p26 = scmp.eq.s32.totalorder %s25, 0
      %s28 = sadd.s32 %s27, 1
      %s29 = scalar_select %p26, %s27, %s28
      %p32 = pneg %p26
      %p33 = scmp.eq.s32.totalorder %s17, 1
      %p34 = por %p32, %p33
      %p35 = scmp.ne.s32.totalorder %s27, %s30
      %p36 = scmp.eq.s32.totalorder %s17, 0
      %p37 = por %p35, %p36
      %p38 = scmp.ne.s32.totalorder %s27, %s30
      %p39 = scmp.eq.s32.totalorder %s22, 1
      %p40 = por %p38, %p39
      %p41 = scmp.ne.s32.totalorder %s30, %s31
      %p42 = scmp.eq.s32.totalorder %s22, 0
      %p43 = por %p41, %p42
      %p44 = scmp.ne.s32.totalorder %s30, %s31
      %p45 = scmp.eq.s32.totalorder %s23, 1
      %p46 = por %p44, %p45
      %p48 = scmp.ne.s32.totalorder %s31, %s47
      %p49 = scmp.eq.s32.totalorder %s23, 0
      %p50 = por %p48, %p49
      %s52 = sadd.s32 %s51, 1
      %p55 = scmp.eq.s32.totalorder %s17, 1
      %p56 = scmp.ne.s32.totalorder %s51, %s53
      %p57 = scmp.eq.s32.totalorder %s17, 0
      %p58 = por %p56, %p57
      %p59 = scmp.ne.s32.totalorder %s51, %s53
      %p60 = scmp.eq.s32.totalorder %s22, 1
      %p61 = por %p59, %p60
      %p62 = scmp.ne.s32.totalorder %s53, %s54
      %p63 = scmp.eq.s32.totalorder %s22, 0
      %p64 = por %p62, %p63
      %p65 = scmp.ne.s32.totalorder %s53, %s54
      %p66 = scmp.eq.s32.totalorder %s23, 1
      %p67 = por %p65, %p66
      %p69 = scmp.ne.s32.totalorder %s54, %s68
      %p70 = scmp.eq.s32.totalorder %s23, 0
      %p71 = por %p69, %p70
      %s73 = sadd.s32 %s72, 1
      %p76 = scmp.eq.s32.totalorder %s17, 1
      %p77 = scmp.ne.s32.totalorder %s72, %s74
      %p78 = scmp.eq.s32.totalorder %s17, 0
      %p79 = por %p77, %p78
      %p80 = scmp.ne.s32.totalorder %s72, %s74
      %p81 = scmp.eq.s32.totalorder %s22, 1
      %p82 = por %p80, %p81
      %p83 = scmp.ne.s32.totalorder %s74, %s75
      %p84 = scmp.eq.s32.totalorder %s22, 0
      %p85 = por %p83, %p84
      %p86 = scmp.ne.s32.totalorder %s74, %s75
      %p87 = scmp.eq.s32.totalorder %s23, 1
      %p88 = por %p86, %p87
      %p90 = scmp.ne.s32.totalorder %s75, %s89
      %p91 = scmp.eq.s32.totalorder %s23, 0
      %p92 = por %p90, %p91
      %s94 = sadd.s32 %s93, 1
      %p97 = scmp.eq.s32.totalorder %s17, 1
      %p98 = scmp.ne.s32.totalorder %s93, %s95
      %p99 = scmp.eq.s32.totalorder %s17, 0
      %p100 = por %p98, %p99
      %p101 = scmp.ne.s32.totalorder %s93, %s95
      %p102 = scmp.eq.s32.totalorder %s22, 1
      %p103 = por %p101, %p102
      %p104 = scmp.ne.s32.totalorder %s95, %s96
      %p105 = scmp.eq.s32.totalorder %s22, 0
      %p106 = por %p104, %p105
      %p107 = scmp.ne.s32.totalorder %s95, %s96
      %p108 = scmp.eq.s32.totalorder %s23, 1
      %p109 = por %p107, %p108
      %p111 = scmp.ne.s32.totalorder %s96, %s110
      %p112 = scmp.eq.s32.totalorder %s23, 0
      %p113 = por %p111, %p112
      %s115 = sadd.s32 %s114, 1
      %p118 = scmp.eq.s32.totalorder %s17, 1
      %p119 = scmp.ne.s32.totalorder %s114, %s116
      %p120 = scmp.eq.s32.totalorder %s17, 0
      %p121 = por %p119, %p120
      %p122 = scmp.ne.s32.totalorder %s114, %s116
      %p123 = scmp.eq.s32.totalorder %s22, 1
      %p124 = por %p122, %p123
      %p125 = scmp.ne.s32.totalorder %s116, %s117
      %p126 = scmp.eq.s32.totalorder %s22, 0
      %p127 = por %p125, %p126
      %p128 = scmp.ne.s32.totalorder %s116, %s117
      %p129 = scmp.eq.s32.totalorder %s23, 1
      %p130 = por %p128, %p129
      %p132 = scmp.ne.s32.totalorder %s117, %s131
      %p133 = scmp.eq.s32.totalorder %s23, 0
      %p134 = por %p132, %p133
      %s135 = ssub.s32 %s17, %s24
      %p136 = scmp.eq.s32.totalorder %s135, 0
      %s138 = sadd.s32 %s137, 1
      %s139 = scalar_select %p136, %s137, %s138
      %p142 = pneg %p136
      %p143 = scmp.eq.s32.totalorder %s17, 1
      %p144 = por %p142, %p143
      %p145 = scmp.ne.s32.totalorder %s137, %s140
      %p146 = scmp.eq.s32.totalorder %s17, 0
      %p147 = por %p145, %p146
      %p148 = scmp.ne.s32.totalorder %s137, %s140
      %p149 = scmp.eq.s32.totalorder %s22, 1
      %p150 = por %p148, %p149
      %p151 = scmp.ne.s32.totalorder %s140, %s141
      %p152 = scmp.eq.s32.totalorder %s22, 0
      %p153 = por %p151, %p152
      %p154 = scmp.ne.s32.totalorder %s140, %s141
      %p155 = scmp.eq.s32.totalorder %s23, 1
      %p156 = por %p154, %p155
      %p158 = scmp.ne.s32.totalorder %s141, %s157
      %p159 = scmp.eq.s32.totalorder %s23, 0
      %p160 = por %p158, %p159
      %p161 = scmp.le.s32.totalorder 1, %s17
      %p162 = scmp.lt.s32.totalorder %s17, 3
      %p163 = pnand %p161, %p162
      %p164 = pneg %p163
      // Predicated region
      $region9: #{to_image_bilinear.1} parent=5 // pred_check
        _
      $region10: #{to_image_bilinear.1} parent=5 // pred_check_branch
        %166 = sbr.rel (%p163) target = $region12
      $region11: #{to_image_bilinear.1} parent=5 // pred_region
        %s167 = ssub.s32 %s17, 1
        // Predicated region
        $region13: #{to_image_bilinear.1} parent=11 // pred_check
          %p168 = pneg %p64
        $region14: #{to_image_bilinear.1} parent=11 // pred_check_branch
          %170 = sbr.rel (%p168) target = $region16
        $region15: #{to_image_bilinear.1} parent=11 // pred_region
          _
        $region16: #{to_image_bilinear.1} parent=11 // pred_fallthru
          _
        // Predicated region
        $region17: #{to_image_bilinear.1} parent=11 // pred_check
          %p171 = pneg %p85
        $region18: #{to_image_bilinear.1} parent=11 // pred_check_branch
          %173 = sbr.rel (%p171) target = $region20
        $region19: #{to_image_bilinear.1} parent=11 // pred_region
          _
        $region20: #{to_image_bilinear.1} parent=11 // pred_fallthru
          _
        // Predicated region
        $region21: #{to_image_bilinear.1} parent=11 // pred_check
          %p174 = pneg %p106
        $region22: #{to_image_bilinear.1} parent=11 // pred_check_branch
          %176 = sbr.rel (%p174) target = $region24
        $region23: #{to_image_bilinear.1} parent=11 // pred_region
          _
        $region24: #{to_image_bilinear.1} parent=11 // pred_fallthru
          _
        // Predicated region
        $region25: #{to_image_bilinear.1} parent=11 // pred_check
          %p177 = pneg %p127
        $region26: #{to_image_bilinear.1} parent=11 // pred_check_branch
          %179 = sbr.rel (%p177) target = $region28
        $region27: #{to_image_bilinear.1} parent=11 // pred_region
          _
        $region28: #{to_image_bilinear.1} parent=11 // pred_fallthru
          _
      $region12: #{to_image_bilinear.1} parent=5 // pred_fallthru
        _
      %p180 = scmp.lt.s32.totalorder %s17, 2
      // Predicated region
      $region29: #{to_image_bilinear.1} parent=5 // pred_check
        %p181 = pneg %p180
      $region30: #{to_image_bilinear.1} parent=5 // pred_check_branch
        %183 = sbr.rel (%p181) target = $region32
      $region31: #{to_image_bilinear.1} parent=5 // pred_region
        // Predicated region
        $region33: #{to_image_bilinear.1} parent=31 // pred_check
          %p184 = pneg %p37
        $region34: #{to_image_bilinear.1} parent=31 // pred_check_branch
          %186 = sbr.rel (%p184) target = $region36
        $region35: #{to_image_bilinear.1} parent=31 // pred_region
          %s187 = sand.u32 %s27, 1
          %s188 = scalar_lea.sflag [#allocation3], %s187
          %s189 = sand.u32 %s27, 1
          %s190 = smul.addr %s189, 64
          %s191 = scalar_lea.vmem [#allocation2], %s190
          %193 = vsyncadd %s188, 0
          %s194 = smul.addr %s17, 8
          %s195 = smul.addr %s194, 8
          %s196 = scalar_lea.hbm %s0, %s195
          %s197 = sshll.u32 %s196, 4
          %s198 = int_to_ptr.hbm [resolvable:$true] %s197
          %s199 = sshll.u32 %s191, 4
          %s200 = int_to_ptr.vmem [resolvable:$true] %s199
          %205 = dma.hbm_to_vmem [thread:$0]  %s198, 1024, %s200, %s188, 128, 128, 8
        $region36: #{to_image_bilinear.1} parent=31 // pred_fallthru
          _
      $region32: #{to_image_bilinear.1} parent=5 // pred_fallthru
        _
      %p206 = scmp.le.s32.totalorder 1, %s17
      %p207 = scmp.lt.s32.totalorder %s17, 3
      %p208 = pnand %p206, %p207
      %p209 = pneg %p208
      // Predicated region
      $region37: #{to_image_bilinear.1} parent=5 // pred_check
        _
      $region38: #{to_image_bilinear.1} parent=5 // pred_check_branch
        %211 = sbr.rel (%p208) target = $region40
      $region39: #{to_image_bilinear.1} parent=5 // pred_region
        %s212 = ssub.s32 %s17, 1
        %s213 = sand.u32 %s30, 1
        %s214 = scalar_lea.sflag [#allocation3], %s213
        %s215 = sand.u32 %s30, 1
        %s216 = smul.addr %s215, 64
        %s217 = scalar_lea.vmem [#allocation2], %s216
        // Predicated region
        $region41: #{to_image_bilinear.1} parent=39 // pred_check
          %p218 = pneg %p43
        $region42: #{to_image_bilinear.1} parent=39 // pred_check_branch
          %220 = sbr.rel (%p218) target = $region44
        $region43: #{to_image_bilinear.1} parent=39 // pred_region
          %222 = dma.done %s214, 1024
        $region44: #{to_image_bilinear.1} parent=39 // pred_fallthru
          _
        %s223 = sand.u32 %s30, 1
        %s224 = scalar_lea.sflag [#allocation3], %s223
        %s225 = sand.u32 %s30, 1
        %s226 = smul.addr %s225, 64
        %s227 = scalar_lea.vmem [#allocation2], %s226
        %p228 = pneg %p43
        %p229 = pneg %p40
        %p230 = pneg %p64
        %p231 = pneg %p61
        %p232 = pneg %p85
        %p233 = pneg %p82
        %p234 = pneg %p106
        %p235 = pneg %p103
        %p236 = pneg %p127
        %p237 = pneg %p124
        %p238 = pneg %p153
        %p239 = pneg %p150
        %s240 = sand.u32 %s140, 1
        %s241 = scalar_lea.sflag [#allocation4], %s240
        %s242 = sand.u32 %s140, 1
        %s243 = smul.addr %s242, 256
        %s244 = scalar_lea.vmem [#allocation5], %s243
        %v246 = vld [vmem:[%s217] sm:$0xff]
        %v247 = vld [vmem:[%s217 + $0x8] sm:$0xff]
        %v248 = vld [vmem:[%s217 + $0x10] sm:$0xff]
        %v249 = vld [vmem:[%s217 + $0x18] sm:$0xff]
        %v250 = vld [vmem:[%s217 + $0x20] sm:$0xff]
        %v251 = vld [vmem:[%s217 + $0x28] sm:$0xff]
        %v252 = vld [vmem:[%s217 + $0x30] sm:$0xff]
        %v253 = vld [vmem:[%s217 + $0x38] sm:$0xff]
        %v254 = vld [vmem:[%s1] sm:$0x1]
        %v255 = vld [vmem:[%s1 + $0x1] sm:$0x1]
        %v256 = vld [vmem:[%s1 + $0x2] sm:$0x1]
        %v257 = vld [vmem:[%s1 + $0x3] sm:$0x1]
        %v258 = vld [vmem:[%s1 + $0x4] sm:$0x1]
        %v259 = vld [vmem:[%s1 + $0x5] sm:$0x1]
        %v260 = vld [vmem:[%s1 + $0x6] sm:$0x1]
        %v261 = vld [vmem:[%s1 + $0x7] sm:$0x1]
        %v262 = vld [vmem:[%s1 + $0x8] sm:$0x1]
        %v263 = vld [vmem:[%s1 + $0x9] sm:$0x1]
        %v264 = vld [vmem:[%s1 + $0xa] sm:$0x1]
        %v265 = vld [vmem:[%s1 + $0xb] sm:$0x1]
        %v266 = vld [vmem:[%s1 + $0xc] sm:$0x1]
        %v267 = vld [vmem:[%s1 + $0xd] sm:$0x1]
        %v268 = vld [vmem:[%s1 + $0xe] sm:$0x1]
        %v269 = vld [vmem:[%s1 + $0xf] sm:$0x1]
        %v270 = vld [vmem:[%s1 + $0x10] sm:$0x1]
        %v271 = vld [vmem:[%s1 + $0x11] sm:$0x1]
        %v272 = vld [vmem:[%s1 + $0x12] sm:$0x1]
        %v273 = vld [vmem:[%s1 + $0x13] sm:$0x1]
        %v274 = vld [vmem:[%s1 + $0x14] sm:$0x1]
        %v275 = vld [vmem:[%s1 + $0x15] sm:$0x1]
        %v276 = vld [vmem:[%s1 + $0x16] sm:$0x1]
        %v277 = vld [vmem:[%s1 + $0x17] sm:$0x1]
        %v278 = vld [vmem:[%s1 + $0x18] sm:$0x1]
        %v279 = vld [vmem:[%s1 + $0x19] sm:$0x1]
        %v280 = vld [vmem:[%s1 + $0x1a] sm:$0x1]
        %v281 = vld [vmem:[%s1 + $0x1b] sm:$0x1]
        %v282 = vld [vmem:[%s1 + $0x1c] sm:$0x1]
        %v283 = vld [vmem:[%s1 + $0x1d] sm:$0x1]
        %v284 = vld [vmem:[%s1 + $0x1e] sm:$0x1]
        %v285 = vld [vmem:[%s1 + $0x1f] sm:$0x1]
        %v286 = vld [vmem:[%s2] sm:$0x1]
        %v287 = vld [vmem:[%s2 + $0x1] sm:$0x1]
        %v288 = vld [vmem:[%s2 + $0x2] sm:$0x1]
        %v289 = vld [vmem:[%s2 + $0x3] sm:$0x1]
        %v290 = vld [vmem:[%s2 + $0x4] sm:$0x1]
        %v291 = vld [vmem:[%s2 + $0x5] sm:$0x1]
        %v292 = vld [vmem:[%s2 + $0x6] sm:$0x1]
        %v293 = vld [vmem:[%s2 + $0x7] sm:$0x1]
        %v294 = vpack.c.bf16 %v247, %v246
        %v295 = vpack.c.bf16 %v249, %v248
        %v296 = vpack.c.bf16 %v251, %v250
        %v297 = vpack.c.bf16 %v253, %v252
        %v298 = vld [vmem:[%s3] sm:$0xf]
        %v299 = vld [vmem:[%s3 + $0x4] sm:$0xf]
        %v302 = vunpack.c.l.b16 %v298
        %v303 = vunpack.c.l.b16 %v299
        %v304 = vpack.c.b16 %v303, %v302
        %vm306 = vcmask 130048
        %v308 = vsel %vm306, %v294, 0
        %v311 = vsel %vm306, %v295, 0
        %v314 = vsel %vm306, %v296, 0
        %v317 = vsel %vm306, %v297, 0
        %319 = vmatpush.bf16.msra.mxu0 0
        %320 = vmatpush.bf16.msra.mxu0 0
        %321 = vmatpush.bf16.msra.mxu0 0
        %322 = vmatpush.bf16.msra.mxu0 0
        %323 = vmatpush.bf16.msra.mxu0 0
        %324 = vmatpush.bf16.msra.mxu0 0
        %325 = vmatpush.bf16.msra.mxu0 0
        %326 = vmatpush.bf16.msra.mxu0 %v304
        %327 = vmatmul.bf16.gmra.mxu0 %v308
        %v328 = vpop.f32.mrf.mxu0
        %v329 = vadd.f32 0.0, %v328
        %v330 = vpop.f32.mrf.mxu0
        %v331 = vadd.f32 0.0, %v330
        %332 = vmatmul.bf16.gmra.mxu0 %v311
        %v333 = vpop.f32.mrf.mxu0
        %v334 = vadd.f32 0.0, %v333
        %v335 = vpop.f32.mrf.mxu0
        %v336 = vadd.f32 0.0, %v335
        %337 = vmatmul.bf16.gmra.mxu0 %v314
        %v338 = vpop.f32.mrf.mxu0
        %v339 = vadd.f32 0.0, %v338
        %v340 = vpop.f32.mrf.mxu0
        %v341 = vadd.f32 0.0, %v340
        %342 = vmatmul.bf16.gmra.mxu0 %v317
        %v343 = vpop.f32.mrf.mxu0
        %v344 = vadd.f32 0.0, %v343
        %v345 = vpop.f32.mrf.mxu0
        %v346 = vadd.f32 0.0, %v345
        %347 = vdwg.mxu0
        %v348 = vpack.c.bf16 %v329, %v329
        %v349 = vpack.c.bf16 %v331, %v331
        %v350 = vpack.c.bf16 %v334, %v334
        %v351 = vpack.c.bf16 %v336, %v336
        %v352 = vpack.c.bf16 %v339, %v339
        %v353 = vpack.c.bf16 %v341, %v341
        %v354 = vpack.c.bf16 %v344, %v344
        %v355 = vpack.c.bf16 %v346, %v346
        %v356 = vld [vmem:[%s4] sm:$0xf]
        %v357 = vld [vmem:[%s4 + $0x4] sm:$0xf]
        %v358 = vld [vmem:[%s4 + $0x8] sm:$0xf]
        %v359 = vld [vmem:[%s4 + $0xc] sm:$0xf]
        %v364 = vunpack.c.l.b16 %v356
        %v365 = vunpack.c.l.b16 %v357
        %v366 = vunpack.c.l.b16 %v358
        %v367 = vunpack.c.l.b16 %v359
        %v368 = vpack.c.b16 %v365, %v364
        %v369 = vpack.c.b16 %v367, %v366
        %v372 = vunpack.c.l.b16 %v348
        %v373 = vunpack.c.l.b16 %v349
        %v374 = vpack.c.b16 %v373, %v372
        %v377 = vsel %vm306, %v368, 0
        %v380 = vsel %vm306, %v369, 0
        %382 = vmatpush.bf16.msra.mxu0 0
        %383 = vmatpush.bf16.msra.mxu0 0
        %384 = vmatpush.bf16.msra.mxu0 0
        %385 = vmatpush.bf16.msra.mxu0 0
        %386 = vmatpush.bf16.msra.mxu0 0
        %387 = vmatpush.bf16.msra.mxu0 0
        %388 = vmatpush.bf16.msra.mxu0 0
        %389 = vmatpush.bf16.msra.mxu0 %v374
        %390 = vmatmul.bf16.gmra.mxu0 %v377
        %v391 = vpop.f32.mrf.mxu0
        %v392 = vadd.f32 0.0, %v391
        %v393 = vpop.f32.mrf.mxu0
        %v394 = vadd.f32 0.0, %v393
        %395 = vmatmul.bf16.gmra.mxu0 %v380
        %v396 = vpop.f32.mrf.mxu0
        %v397 = vadd.f32 0.0, %v396
        %v398 = vpop.f32.mrf.mxu0
        %v399 = vadd.f32 0.0, %v398
        %400 = vdwg.mxu0
        %v403 = vunpack.c.l.b16 %v350
        %v404 = vunpack.c.l.b16 %v351
        %v405 = vpack.c.b16 %v404, %v403
        %407 = vmatpush.bf16.msra.mxu0 0
        %408 = vmatpush.bf16.msra.mxu0 0
        %409 = vmatpush.bf16.msra.mxu0 0
        %410 = vmatpush.bf16.msra.mxu0 0
        %411 = vmatpush.bf16.msra.mxu0 0
        %412 = vmatpush.bf16.msra.mxu0 0
        %413 = vmatpush.bf16.msra.mxu0 0
        %414 = vmatpush.bf16.msra.mxu0 %v405
        %415 = vmatmul.bf16.gmra.mxu0 %v377
        %v416 = vpop.f32.mrf.mxu0
        %v417 = vadd.f32 0.0, %v416
        %v418 = vpop.f32.mrf.mxu0
        %v419 = vadd.f32 0.0, %v418
        %420 = vmatmul.bf16.gmra.mxu0 %v380
        %v421 = vpop.f32.mrf.mxu0
        %v422 = vadd.f32 0.0, %v421
        %v423 = vpop.f32.mrf.mxu0
        %v424 = vadd.f32 0.0, %v423
        %425 = vdwg.mxu0
        %v428 = vunpack.c.l.b16 %v352
        %v429 = vunpack.c.l.b16 %v353
        %v430 = vpack.c.b16 %v429, %v428
        %432 = vmatpush.bf16.msra.mxu0 0
        %433 = vmatpush.bf16.msra.mxu0 0
        %434 = vmatpush.bf16.msra.mxu0 0
        %435 = vmatpush.bf16.msra.mxu0 0
        %436 = vmatpush.bf16.msra.mxu0 0
        %437 = vmatpush.bf16.msra.mxu0 0
        %438 = vmatpush.bf16.msra.mxu0 0
        %439 = vmatpush.bf16.msra.mxu0 %v430
        %440 = vmatmul.bf16.gmra.mxu0 %v377
        %v441 = vpop.f32.mrf.mxu0
        %v442 = vadd.f32 0.0, %v441
        %v443 = vpop.f32.mrf.mxu0
        %v444 = vadd.f32 0.0, %v443
        %445 = vmatmul.bf16.gmra.mxu0 %v380
        %v446 = vpop.f32.mrf.mxu0
        %v447 = vadd.f32 0.0, %v446
        %v448 = vpop.f32.mrf.mxu0
        %v449 = vadd.f32 0.0, %v448
        %450 = vdwg.mxu0
        %v453 = vunpack.c.l.b16 %v354
        %v454 = vunpack.c.l.b16 %v355
        %v455 = vpack.c.b16 %v454, %v453
        %457 = vmatpush.bf16.msra.mxu0 0
        %458 = vmatpush.bf16.msra.mxu0 0
        %459 = vmatpush.bf16.msra.mxu0 0
        %460 = vmatpush.bf16.msra.mxu0 0
        %461 = vmatpush.bf16.msra.mxu0 0
        %462 = vmatpush.bf16.msra.mxu0 0
        %463 = vmatpush.bf16.msra.mxu0 0
        %464 = vmatpush.bf16.msra.mxu0 %v455
        %465 = vmatmul.bf16.gmra.mxu0 %v377
        %v466 = vpop.f32.mrf.mxu0
        %v467 = vadd.f32 0.0, %v466
        %v468 = vpop.f32.mrf.mxu0
        %v469 = vadd.f32 0.0, %v468
        %470 = vmatmul.bf16.gmra.mxu0 %v380
        %v471 = vpop.f32.mrf.mxu0
        %v472 = vadd.f32 0.0, %v471
        %v473 = vpop.f32.mrf.mxu0
        %v474 = vadd.f32 0.0, %v473
        %475 = vdwg.mxu0
        %v484 = vperm.slane %v286, 0
        %v485 = vperm.slane %v287, 0
        %v486 = vperm.slane %v288, 0
        %v487 = vperm.slane %v289, 0
        %v488 = vperm.slane %v290, 0
        %v489 = vperm.slane %v291, 0
        %v490 = vperm.slane %v292, 0
        %v491 = vperm.slane %v293, 0
        %492 = vset.pattern.permute.xlu0 0
        %493 = vperm.xlu0 %492, %v484
        %v494 = vpop.permute.xlu0 %493
        %496 = vset.pattern.permute.xlu0 0
        %497 = vperm.xlu0 %496, %v485
        %v498 = vpop.permute.xlu0 %497
        %500 = vset.pattern.permute.xlu0 0
        %501 = vperm.xlu0 %500, %v486
        %v502 = vpop.permute.xlu0 %501
        %504 = vset.pattern.permute.xlu0 0
        %505 = vperm.xlu0 %504, %v487
        %v506 = vpop.permute.xlu0 %505
        %508 = vset.pattern.permute.xlu0 0
        %509 = vperm.xlu0 %508, %v488
        %v510 = vpop.permute.xlu0 %509
        %512 = vset.pattern.permute.xlu0 0
        %513 = vperm.xlu0 %512, %v489
        %v514 = vpop.permute.xlu0 %513
        %516 = vset.pattern.permute.xlu0 0
        %517 = vperm.xlu0 %516, %v490
        %v518 = vpop.permute.xlu0 %517
        %520 = vset.pattern.permute.xlu0 0
        %521 = vperm.xlu0 %520, %v491
        %v522 = vpop.permute.xlu0 %521
        %v532 = vperm.slane %v254, 0
        %v533 = vperm.slane %v255, 0
        %v534 = vperm.slane %v256, 0
        %v535 = vperm.slane %v257, 0
        %v536 = vperm.slane %v258, 0
        %v537 = vperm.slane %v259, 0
        %v538 = vperm.slane %v260, 0
        %v539 = vperm.slane %v261, 0
        %540 = vset.pattern.permute.xlu0 0
        %541 = vperm.xlu0 %540, %v532
        %v542 = vpop.permute.xlu0 %541
        %544 = vset.pattern.permute.xlu0 0
        %545 = vperm.xlu0 %544, %v533
        %v546 = vpop.permute.xlu0 %545
        %548 = vset.pattern.permute.xlu0 0
        %549 = vperm.xlu0 %548, %v534
        %v550 = vpop.permute.xlu0 %549
        %552 = vset.pattern.permute.xlu0 0
        %553 = vperm.xlu0 %552, %v535
        %v554 = vpop.permute.xlu0 %553
        %556 = vset.pattern.permute.xlu0 0
        %557 = vperm.xlu0 %556, %v536
        %v558 = vpop.permute.xlu0 %557
        %560 = vset.pattern.permute.xlu0 0
        %561 = vperm.xlu0 %560, %v537
        %v562 = vpop.permute.xlu0 %561
        %564 = vset.pattern.permute.xlu0 0
        %565 = vperm.xlu0 %564, %v538
        %v566 = vpop.permute.xlu0 %565
        %568 = vset.pattern.permute.xlu0 0
        %569 = vperm.xlu0 %568, %v539
        %v570 = vpop.permute.xlu0 %569
        %v572 = vmul.f32 %v542, %v392
        %v573 = vmul.f32 %v542, %v394
        %v574 = vmul.f32 %v542, %v397
        %v575 = vmul.f32 %v542, %v399
        %v576 = vmul.f32 %v546, %v392
        %v577 = vmul.f32 %v546, %v394
        %v578 = vmul.f32 %v546, %v397
        %v579 = vmul.f32 %v546, %v399
        %v580 = vmul.f32 %v550, %v392
        %v581 = vmul.f32 %v550, %v394
        %v582 = vmul.f32 %v550, %v397
        %v583 = vmul.f32 %v550, %v399
        %v584 = vmul.f32 %v554, %v392
        %v585 = vmul.f32 %v554, %v394
        %v586 = vmul.f32 %v554, %v397
        %v587 = vmul.f32 %v554, %v399
        %v588 = vmul.f32 %v558, %v392
        %v589 = vmul.f32 %v558, %v394
        %v590 = vmul.f32 %v558, %v397
        %v591 = vmul.f32 %v558, %v399
        %v592 = vmul.f32 %v562, %v392
        %v593 = vmul.f32 %v562, %v394
        %v594 = vmul.f32 %v562, %v397
        %v595 = vmul.f32 %v562, %v399
        %v596 = vmul.f32 %v566, %v392
        %v597 = vmul.f32 %v566, %v394
        %v598 = vmul.f32 %v566, %v397
        %v599 = vmul.f32 %v566, %v399
        %v600 = vmul.f32 %v570, %v392
        %v601 = vmul.f32 %v570, %v394
        %v602 = vmul.f32 %v570, %v397
        %v603 = vmul.f32 %v570, %v399
        %v604 = vadd.f32 %v494, %v572
        %v605 = vadd.f32 %v494, %v573
        %v606 = vadd.f32 %v494, %v574
        %v607 = vadd.f32 %v494, %v575
        %v608 = vadd.f32 %v498, %v576
        %v609 = vadd.f32 %v498, %v577
        %v610 = vadd.f32 %v498, %v578
        %v611 = vadd.f32 %v498, %v579
        %v612 = vadd.f32 %v502, %v580
        %v613 = vadd.f32 %v502, %v581
        %v614 = vadd.f32 %v502, %v582
        %v615 = vadd.f32 %v502, %v583
        %v616 = vadd.f32 %v506, %v584
        %v617 = vadd.f32 %v506, %v585
        %v618 = vadd.f32 %v506, %v586
        %v619 = vadd.f32 %v506, %v587
        %v620 = vadd.f32 %v510, %v588
        %v621 = vadd.f32 %v510, %v589
        %v622 = vadd.f32 %v510, %v590
        %v623 = vadd.f32 %v510, %v591
        %v624 = vadd.f32 %v514, %v592
        %v625 = vadd.f32 %v514, %v593
        %v626 = vadd.f32 %v514, %v594
        %v627 = vadd.f32 %v514, %v595
        %v628 = vadd.f32 %v518, %v596
        %v629 = vadd.f32 %v518, %v597
        %v630 = vadd.f32 %v518, %v598
        %v631 = vadd.f32 %v518, %v599
        %v632 = vadd.f32 %v522, %v600
        %v633 = vadd.f32 %v522, %v601
        %v634 = vadd.f32 %v522, %v602
        %v635 = vadd.f32 %v522, %v603
        %v644 = vperm.slane %v262, 0
        %v645 = vperm.slane %v263, 0
        %v646 = vperm.slane %v264, 0
        %v647 = vperm.slane %v265, 0
        %v648 = vperm.slane %v266, 0
        %v649 = vperm.slane %v267, 0
        %v650 = vperm.slane %v268, 0
        %v651 = vperm.slane %v269, 0
        %652 = vset.pattern.permute.xlu0 0
        %653 = vperm.xlu0 %652, %v644
        %v654 = vpop.permute.xlu0 %653
        %656 = vset.pattern.permute.xlu0 0
        %657 = vperm.xlu0 %656, %v645
        %v658 = vpop.permute.xlu0 %657
        %660 = vset.pattern.permute.xlu0 0
        %661 = vperm.xlu0 %660, %v646
        %v662 = vpop.permute.xlu0 %661
        %664 = vset.pattern.permute.xlu0 0
        %665 = vperm.xlu0 %664, %v647
        %v666 = vpop.permute.xlu0 %665
        %668 = vset.pattern.permute.xlu0 0
        %669 = vperm.xlu0 %668, %v648
        %v670 = vpop.permute.xlu0 %669
        %672 = vset.pattern.permute.xlu0 0
        %673 = vperm.xlu0 %672, %v649
        %v674 = vpop.permute.xlu0 %673
        %676 = vset.pattern.permute.xlu0 0
        %677 = vperm.xlu0 %676, %v650
        %v678 = vpop.permute.xlu0 %677
        %680 = vset.pattern.permute.xlu0 0
        %681 = vperm.xlu0 %680, %v651
        %v682 = vpop.permute.xlu0 %681
        %v684 = vmul.f32 %v654, %v417
        %v685 = vmul.f32 %v654, %v419
        %v686 = vmul.f32 %v654, %v422
        %v687 = vmul.f32 %v654, %v424
        %v688 = vmul.f32 %v658, %v417
        %v689 = vmul.f32 %v658, %v419
        %v690 = vmul.f32 %v658, %v422
        %v691 = vmul.f32 %v658, %v424
        %v692 = vmul.f32 %v662, %v417
        %v693 = vmul.f32 %v662, %v419
        %v694 = vmul.f32 %v662, %v422
        %v695 = vmul.f32 %v662, %v424
        %v696 = vmul.f32 %v666, %v417
        %v697 = vmul.f32 %v666, %v419
        %v698 = vmul.f32 %v666, %v422
        %v699 = vmul.f32 %v666, %v424
        %v700 = vmul.f32 %v670, %v417
        %v701 = vmul.f32 %v670, %v419
        %v702 = vmul.f32 %v670, %v422
        %v703 = vmul.f32 %v670, %v424
        %v704 = vmul.f32 %v674, %v417
        %v705 = vmul.f32 %v674, %v419
        %v706 = vmul.f32 %v674, %v422
        %v707 = vmul.f32 %v674, %v424
        %v708 = vmul.f32 %v678, %v417
        %v709 = vmul.f32 %v678, %v419
        %v710 = vmul.f32 %v678, %v422
        %v711 = vmul.f32 %v678, %v424
        %v712 = vmul.f32 %v682, %v417
        %v713 = vmul.f32 %v682, %v419
        %v714 = vmul.f32 %v682, %v422
        %v715 = vmul.f32 %v682, %v424
        %v716 = vadd.f32 %v604, %v684
        %v717 = vadd.f32 %v605, %v685
        %v718 = vadd.f32 %v606, %v686
        %v719 = vadd.f32 %v607, %v687
        %v720 = vadd.f32 %v608, %v688
        %v721 = vadd.f32 %v609, %v689
        %v722 = vadd.f32 %v610, %v690
        %v723 = vadd.f32 %v611, %v691
        %v724 = vadd.f32 %v612, %v692
        %v725 = vadd.f32 %v613, %v693
        %v726 = vadd.f32 %v614, %v694
        %v727 = vadd.f32 %v615, %v695
        %v728 = vadd.f32 %v616, %v696
        %v729 = vadd.f32 %v617, %v697
        %v730 = vadd.f32 %v618, %v698
        %v731 = vadd.f32 %v619, %v699
        %v732 = vadd.f32 %v620, %v700
        %v733 = vadd.f32 %v621, %v701
        %v734 = vadd.f32 %v622, %v702
        %v735 = vadd.f32 %v623, %v703
        %v736 = vadd.f32 %v624, %v704
        %v737 = vadd.f32 %v625, %v705
        %v738 = vadd.f32 %v626, %v706
        %v739 = vadd.f32 %v627, %v707
        %v740 = vadd.f32 %v628, %v708
        %v741 = vadd.f32 %v629, %v709
        %v742 = vadd.f32 %v630, %v710
        %v743 = vadd.f32 %v631, %v711
        %v744 = vadd.f32 %v632, %v712
        %v745 = vadd.f32 %v633, %v713
        %v746 = vadd.f32 %v634, %v714
        %v747 = vadd.f32 %v635, %v715
        %v756 = vperm.slane %v270, 0
        %v757 = vperm.slane %v271, 0
        %v758 = vperm.slane %v272, 0
        %v759 = vperm.slane %v273, 0
        %v760 = vperm.slane %v274, 0
        %v761 = vperm.slane %v275, 0
        %v762 = vperm.slane %v276, 0
        %v763 = vperm.slane %v277, 0
        %764 = vset.pattern.permute.xlu0 0
        %765 = vperm.xlu0 %764, %v756
        %v766 = vpop.permute.xlu0 %765
        %768 = vset.pattern.permute.xlu0 0
        %769 = vperm.xlu0 %768, %v757
        %v770 = vpop.permute.xlu0 %769
        %772 = vset.pattern.permute.xlu0 0
        %773 = vperm.xlu0 %772, %v758
        %v774 = vpop.permute.xlu0 %773
        %776 = vset.pattern.permute.xlu0 0
        %777 = vperm.xlu0 %776, %v759
        %v778 = vpop.permute.xlu0 %777
        %780 = vset.pattern.permute.xlu0 0
        %781 = vperm.xlu0 %780, %v760
        %v782 = vpop.permute.xlu0 %781
        %784 = vset.pattern.permute.xlu0 0
        %785 = vperm.xlu0 %784, %v761
        %v786 = vpop.permute.xlu0 %785
        %788 = vset.pattern.permute.xlu0 0
        %789 = vperm.xlu0 %788, %v762
        %v790 = vpop.permute.xlu0 %789
        %792 = vset.pattern.permute.xlu0 0
        %793 = vperm.xlu0 %792, %v763
        %v794 = vpop.permute.xlu0 %793
        %v796 = vmul.f32 %v766, %v442
        %v797 = vmul.f32 %v766, %v444
        %v798 = vmul.f32 %v766, %v447
        %v799 = vmul.f32 %v766, %v449
        %v800 = vmul.f32 %v770, %v442
        %v801 = vmul.f32 %v770, %v444
        %v802 = vmul.f32 %v770, %v447
        %v803 = vmul.f32 %v770, %v449
        %v804 = vmul.f32 %v774, %v442
        %v805 = vmul.f32 %v774, %v444
        %v806 = vmul.f32 %v774, %v447
        %v807 = vmul.f32 %v774, %v449
        %v808 = vmul.f32 %v778, %v442
        %v809 = vmul.f32 %v778, %v444
        %v810 = vmul.f32 %v778, %v447
        %v811 = vmul.f32 %v778, %v449
        %v812 = vmul.f32 %v782, %v442
        %v813 = vmul.f32 %v782, %v444
        %v814 = vmul.f32 %v782, %v447
        %v815 = vmul.f32 %v782, %v449
        %v816 = vmul.f32 %v786, %v442
        %v817 = vmul.f32 %v786, %v444
        %v818 = vmul.f32 %v786, %v447
        %v819 = vmul.f32 %v786, %v449
        %v820 = vmul.f32 %v790, %v442
        %v821 = vmul.f32 %v790, %v444
        %v822 = vmul.f32 %v790, %v447
        %v823 = vmul.f32 %v790, %v449
        %v824 = vmul.f32 %v794, %v442
        %v825 = vmul.f32 %v794, %v444
        %v826 = vmul.f32 %v794, %v447
        %v827 = vmul.f32 %v794, %v449
        %v828 = vadd.f32 %v716, %v796
        %v829 = vadd.f32 %v717, %v797
        %v830 = vadd.f32 %v718, %v798
        %v831 = vadd.f32 %v719, %v799
        %v832 = vadd.f32 %v720, %v800
        %v833 = vadd.f32 %v721, %v801
        %v834 = vadd.f32 %v722, %v802
        %v835 = vadd.f32 %v723, %v803
        %v836 = vadd.f32 %v724, %v804
        %v837 = vadd.f32 %v725, %v805
        %v838 = vadd.f32 %v726, %v806
        %v839 = vadd.f32 %v727, %v807
        %v840 = vadd.f32 %v728, %v808
        %v841 = vadd.f32 %v729, %v809
        %v842 = vadd.f32 %v730, %v810
        %v843 = vadd.f32 %v731, %v811
        %v844 = vadd.f32 %v732, %v812
        %v845 = vadd.f32 %v733, %v813
        %v846 = vadd.f32 %v734, %v814
        %v847 = vadd.f32 %v735, %v815
        %v848 = vadd.f32 %v736, %v816
        %v849 = vadd.f32 %v737, %v817
        %v850 = vadd.f32 %v738, %v818
        %v851 = vadd.f32 %v739, %v819
        %v852 = vadd.f32 %v740, %v820
        %v853 = vadd.f32 %v741, %v821
        %v854 = vadd.f32 %v742, %v822
        %v855 = vadd.f32 %v743, %v823
        %v856 = vadd.f32 %v744, %v824
        %v857 = vadd.f32 %v745, %v825
        %v858 = vadd.f32 %v746, %v826
        %v859 = vadd.f32 %v747, %v827
        %v868 = vperm.slane %v278, 0
        %v869 = vperm.slane %v279, 0
        %v870 = vperm.slane %v280, 0
        %v871 = vperm.slane %v281, 0
        %v872 = vperm.slane %v282, 0
        %v873 = vperm.slane %v283, 0
        %v874 = vperm.slane %v284, 0
        %v875 = vperm.slane %v285, 0
        %876 = vset.pattern.permute.xlu0 0
        %877 = vperm.xlu0 %876, %v868
        %v878 = vpop.permute.xlu0 %877
        %880 = vset.pattern.permute.xlu0 0
        %881 = vperm.xlu0 %880, %v869
        %v882 = vpop.permute.xlu0 %881
        %884 = vset.pattern.permute.xlu0 0
        %885 = vperm.xlu0 %884, %v870
        %v886 = vpop.permute.xlu0 %885
        %888 = vset.pattern.permute.xlu0 0
        %889 = vperm.xlu0 %888, %v871
        %v890 = vpop.permute.xlu0 %889
        %892 = vset.pattern.permute.xlu0 0
        %893 = vperm.xlu0 %892, %v872
        %v894 = vpop.permute.xlu0 %893
        %896 = vset.pattern.permute.xlu0 0
        %897 = vperm.xlu0 %896, %v873
        %v898 = vpop.permute.xlu0 %897
        %900 = vset.pattern.permute.xlu0 0
        %901 = vperm.xlu0 %900, %v874
        %v902 = vpop.permute.xlu0 %901
        %904 = vset.pattern.permute.xlu0 0
        %905 = vperm.xlu0 %904, %v875
        %v906 = vpop.permute.xlu0 %905
        %v908 = vmul.f32 %v878, %v467
        %v909 = vmul.f32 %v878, %v469
        %v910 = vmul.f32 %v878, %v472
        %v911 = vmul.f32 %v878, %v474
        %v912 = vmul.f32 %v882, %v467
        %v913 = vmul.f32 %v882, %v469
        %v914 = vmul.f32 %v882, %v472
        %v915 = vmul.f32 %v882, %v474
        %v916 = vmul.f32 %v886, %v467
        %v917 = vmul.f32 %v886, %v469
        %v918 = vmul.f32 %v886, %v472
        %v919 = vmul.f32 %v886, %v474
        %v920 = vmul.f32 %v890, %v467
        %v921 = vmul.f32 %v890, %v469
        %v922 = vmul.f32 %v890, %v472
        %v923 = vmul.f32 %v890, %v474
        %v924 = vmul.f32 %v894, %v467
        %v925 = vmul.f32 %v894, %v469
        %v926 = vmul.f32 %v894, %v472
        %v927 = vmul.f32 %v894, %v474
        %v928 = vmul.f32 %v898, %v467
        %v929 = vmul.f32 %v898, %v469
        %v930 = vmul.f32 %v898, %v472
        %v931 = vmul.f32 %v898, %v474
        %v932 = vmul.f32 %v902, %v467
        %v933 = vmul.f32 %v902, %v469
        %v934 = vmul.f32 %v902, %v472
        %v935 = vmul.f32 %v902, %v474
        %v936 = vmul.f32 %v906, %v467
        %v937 = vmul.f32 %v906, %v469
        %v938 = vmul.f32 %v906, %v472
        %v939 = vmul.f32 %v906, %v474
        %v940 = vadd.f32 %v828, %v908
        %v941 = vadd.f32 %v829, %v909
        %v942 = vadd.f32 %v830, %v910
        %v943 = vadd.f32 %v831, %v911
        %v944 = vadd.f32 %v832, %v912
        %v945 = vadd.f32 %v833, %v913
        %v946 = vadd.f32 %v834, %v914
        %v947 = vadd.f32 %v835, %v915
        %v948 = vadd.f32 %v836, %v916
        %v949 = vadd.f32 %v837, %v917
        %v950 = vadd.f32 %v838, %v918
        %v951 = vadd.f32 %v839, %v919
        %v952 = vadd.f32 %v840, %v920
        %v953 = vadd.f32 %v841, %v921
        %v954 = vadd.f32 %v842, %v922
        %v955 = vadd.f32 %v843, %v923
        %v956 = vadd.f32 %v844, %v924
        %v957 = vadd.f32 %v845, %v925
        %v958 = vadd.f32 %v846, %v926
        %v959 = vadd.f32 %v847, %v927
        %v960 = vadd.f32 %v848, %v928
        %v961 = vadd.f32 %v849, %v929
        %v962 = vadd.f32 %v850, %v930
        %v963 = vadd.f32 %v851, %v931
        %v964 = vadd.f32 %v852, %v932
        %v965 = vadd.f32 %v853, %v933
        %v966 = vadd.f32 %v854, %v934
        %v967 = vadd.f32 %v855, %v935
        %v968 = vadd.f32 %v856, %v936
        %v969 = vadd.f32 %v857, %v937
        %v970 = vadd.f32 %v858, %v938
        %v971 = vadd.f32 %v859, %v939
        %vm972 = vcmask 261120
        %973 = vst.msk [vmem:[%s244] sm:$0xff] %vm972, %v940
        %974 = vst.msk [vmem:[%s244 + $0x8] sm:$0xff] %vm972, %v941
        %975 = vst.msk [vmem:[%s244 + $0x10] sm:$0xff] %vm972, %v942
        %976 = vst.msk [vmem:[%s244 + $0x18] sm:$0xff] %vm972, %v943
        %977 = vst.msk [vmem:[%s244 + $0x20] sm:$0xff] %vm972, %v944
        %978 = vst.msk [vmem:[%s244 + $0x28] sm:$0xff] %vm972, %v945
        %979 = vst.msk [vmem:[%s244 + $0x30] sm:$0xff] %vm972, %v946
        %980 = vst.msk [vmem:[%s244 + $0x38] sm:$0xff] %vm972, %v947
        %981 = vst.msk [vmem:[%s244 + $0x40] sm:$0xff] %vm972, %v948
        %982 = vst.msk [vmem:[%s244 + $0x48] sm:$0xff] %vm972, %v949
        %983 = vst.msk [vmem:[%s244 + $0x50] sm:$0xff] %vm972, %v950
        %984 = vst.msk [vmem:[%s244 + $0x58] sm:$0xff] %vm972, %v951
        %985 = vst.msk [vmem:[%s244 + $0x60] sm:$0xff] %vm972, %v952
        %986 = vst.msk [vmem:[%s244 + $0x68] sm:$0xff] %vm972, %v953
        %987 = vst.msk [vmem:[%s244 + $0x70] sm:$0xff] %vm972, %v954
        %988 = vst.msk [vmem:[%s244 + $0x78] sm:$0xff] %vm972, %v955
        %989 = vst.msk [vmem:[%s244 + $0x80] sm:$0xff] %vm972, %v956
        %990 = vst.msk [vmem:[%s244 + $0x88] sm:$0xff] %vm972, %v957
        %991 = vst.msk [vmem:[%s244 + $0x90] sm:$0xff] %vm972, %v958
        %992 = vst.msk [vmem:[%s244 + $0x98] sm:$0xff] %vm972, %v959
        %993 = vst.msk [vmem:[%s244 + $0xa0] sm:$0xff] %vm972, %v960
        %994 = vst.msk [vmem:[%s244 + $0xa8] sm:$0xff] %vm972, %v961
        %995 = vst.msk [vmem:[%s244 + $0xb0] sm:$0xff] %vm972, %v962
        %996 = vst.msk [vmem:[%s244 + $0xb8] sm:$0xff] %vm972, %v963
        %997 = vst.msk [vmem:[%s244 + $0xc0] sm:$0xff] %vm972, %v964
        %998 = vst.msk [vmem:[%s244 + $0xc8] sm:$0xff] %vm972, %v965
        %999 = vst.msk [vmem:[%s244 + $0xd0] sm:$0xff] %vm972, %v966
        %1000 = vst.msk [vmem:[%s244 + $0xd8] sm:$0xff] %vm972, %v967
        %1001 = vst.msk [vmem:[%s244 + $0xe0] sm:$0xff] %vm972, %v968
        %1002 = vst.msk [vmem:[%s244 + $0xe8] sm:$0xff] %vm972, %v969
        %1003 = vst.msk [vmem:[%s244 + $0xf0] sm:$0xff] %vm972, %v970
        %1004 = vst.msk [vmem:[%s244 + $0xf8] sm:$0xff] %vm972, %v971
        %s1005 = sand.u32 %s140, 1
        %s1006 = scalar_lea.sflag [#allocation4], %s1005
        %s1007 = sand.u32 %s140, 1
        %s1008 = smul.addr %s1007, 256
        %s1009 = scalar_lea.vmem [#allocation5], %s1008
        // Predicated region
        $region45: #{to_image_bilinear.1} parent=39 // pred_check
          %p1010 = pneg %p150
        $region46: #{to_image_bilinear.1} parent=39 // pred_check_branch
          %1012 = sbr.rel (%p1010) target = $region48
        $region47: #{to_image_bilinear.1} parent=39 // pred_region
          %1014 = vsyncadd %s1006, 0
          %s1015 = smul.addr %s22, 32
          %s1016 = smul.addr %s1015, 8
          %s1017 = scalar_lea.hbm %s5, %s1016
          %s1018 = sshll.u32 %s1009, 4
          %s1019 = int_to_ptr.vmem [resolvable:$true] %s1018
          %s1020 = sshll.u32 %s1017, 4
          %s1021 = int_to_ptr.hbm [resolvable:$true] %s1020
          %1026 = dma.vmem_to_hbm [thread:$0]  %s1019, 4096, %s1021, %s1006, 128, 128, 8
        $region48: #{to_image_bilinear.1} parent=39 // pred_fallthru
          _
      $region40: #{to_image_bilinear.1} parent=5 // pred_fallthru
        _
      %p1027 = scmp.le.s32.totalorder 2, %s17
      // Predicated region
      $region49: #{to_image_bilinear.1} parent=5 // pred_check
        %p1028 = pneg %p1027
      $region50: #{to_image_bilinear.1} parent=5 // pred_check_branch
        %1030 = sbr.rel (%p1028) target = $region52
      $region51: #{to_image_bilinear.1} parent=5 // pred_region
        %s1031 = ssub.s32 %s17, 2
        // Predicated region
        $region53: #{to_image_bilinear.1} parent=51 // pred_check
          %p1032 = pneg %p156
        $region54: #{to_image_bilinear.1} parent=51 // pred_check_branch
          %1034 = sbr.rel (%p1032) target = $region56
        $region55: #{to_image_bilinear.1} parent=51 // pred_region
          %s1035 = sand.u32 %s141, 1
          %s1036 = scalar_lea.sflag [#allocation4], %s1035
          %s1037 = sand.u32 %s141, 1
          %s1038 = smul.addr %s1037, 256
          %s1039 = scalar_lea.vmem [#allocation5], %s1038
          %1041 = dma.done %s1036, 4096
        $region56: #{to_image_bilinear.1} parent=51 // pred_fallthru
          _
      $region52: #{to_image_bilinear.1} parent=5 // pred_fallthru
        _
    $region6: #{to_image_bilinear.1} parent=1 // loop_footer
      %s21 = sadd.s32 1, %s17
    $region7: #{to_image_bilinear.1} parent=1 // loop_footer_branch
      %16 = sbr.rel target = $region3
    $region8: #{to_image_bilinear.1} parent=1 // loop_exit
      _
    %1042 = vsyncpa [#allocation3], 1
    %s1043 = scalar_lea.sflag [#allocation3], 1
    %1044 = vsyncpa %s1043, 1
    %1045 = vsyncpa [#allocation4], 1
    %s1046 = scalar_lea.sflag [#allocation4], 1
    %1047 = vsyncpa %s1046, 1

</llo_original>
